<compile_context>
chip_gen: v6e
topology: v6e:2x2x1
jax: 0.10.0
libtpu: 0.0.40
codegen_flags: <defaults>
</compile_context>

<pallas_src>
import functools

import jax
import jax.numpy as jnp
from jax.experimental import pallas as pl
from jax.experimental.pallas import tpu as pltpu


def _round_up(a, b):
    return (a + b - 1) // b * b


# ----------------------------------------------------------------------------
# Kernel: one grid step per (dst tile i, relation r, src chunk s).
# Inputs : a_ref      (TM, TS)   int8 {0,1} adjacency chunk for relation r
#          invdeg_ref (TM, 1)    f32 1/clamp(in_degree_r, 1) for this dst tile
#          x_ref      (TS, Fi)   bf16 node-feature chunk (source rows)
#          w_ref      (Fi, Fo)   bf16 relation weight W_r
#          init_ref   (TM, Fo)   f32 precomputed  X[tile] @ loop_W + bias
# Output : o_ref      (TM, Fo)   f32, resident across (r, s)
# Scratch: msg_ref    (TM, Fi)   f32 per-relation message accumulator
# ----------------------------------------------------------------------------
def _rgcn_kernel(a_ref, invdeg_ref, x_ref, w_ref, init_ref, o_ref, msg_ref):
    # All program ids / extents computed at the top level of the body (never
    # inside a pl.when branch).
    r = pl.program_id(1)
    s = pl.program_id(2)
    num_r = pl.num_programs(1)
    num_s = pl.num_programs(2)

    # Seed the resident output accumulator with the precomputed
    # self-loop + bias term on the very first visit of this dst tile.
    @pl.when(jnp.logical_and(r == 0, s == 0))
    def _init():
        o_ref[...] = init_ref[...]

    # Reset the per-relation message accumulator at the start of each relation.
    @pl.when(s == 0)
    def _reset_msg():
        msg_ref[...] = jnp.zeros_like(msg_ref)

    # int8 {0,1} -> bf16 (exact), bf16 x bf16 -> f32 accumulate on the MXU.
    a = a_ref[...].astype(jnp.bfloat16)
    msg_ref[...] += jnp.dot(a, x_ref[...], preferred_element_type=jnp.float32)

    # After the last source chunk: right-normalize (VPU, f32-exact) and apply
    # the relation weight (bf16 MXU path, f32 accumulation into o_ref).
    @pl.when(s == num_s - 1)
    def _apply_weight():
        msg = (msg_ref[...] * invdeg_ref[...]).astype(jnp.bfloat16)
        o_ref[...] += jnp.dot(msg, w_ref[...],
                              preferred_element_type=jnp.float32)

    # After the final relation: activation.  Dropout is identity (rate 0 / eval).
    # NOTE: padded dst rows stay exactly 0 (zero init, zero adjacency, relu(0)).
    @pl.when(jnp.logical_and(r == num_r - 1, s == num_s - 1))
    def _finalize():
        o_ref[...] = jnp.maximum(o_ref[...], 0.0)


def rel_graph_conv_layer(adj, x, rel_weights, loop_weight, h_bias, *,
                         block_m=256, block_k=2048):
    """adj: (R, N, N) {0,1} dense per-relation adjacency (A[r, dst, src]),
    x: (N, F_in), rel_weights: (R, F_in, F_out), loop_weight: (F_in, F_out),
    h_bias: (F_out,).  Returns (N, F_out) = relu(sum_r norm(A_r)@X@W_r
    + X@loop_W + bias)."""
    R, N, _ = adj.shape
    F_in = x.shape[1]
    F_out = rel_weights.shape[2]

    # ---- tile selection (lane-dense, bf16/int8 friendly) --------------------
    block_m = max(128, _round_up(int(block_m), 128))
    block_k = max(block_m, _round_up(int(block_k), block_m))

    tm = min(block_m, _round_up(N, 128))
    # Prefer >= 2 dst tiles when the graph allows it so the "parallel" axis
    # actually shards across TensorCores (v7x has 2 TCs / chip).
    if tm > 128 and _round_up(N, tm) == tm:
        tm = 128
    n_pad = _round_up(N, tm)
    if n_pad <= block_k:
        ts = n_pad                      # single source chunk, X fits as one block
    else:
        n_pad = _round_up(n_pad, block_k)
        ts = block_k                    # contraction tiling keeps VMEM flat in N
    num_m = n_pad // tm
    num_s = n_pad // ts

    f_in_pad = _round_up(F_in, 128)
    f_out_pad = _round_up(F_out, 128)

    # ---- host-side prep (single cast of the big adjacency, no f32 copies) ---
    adj_i8 = adj.astype(jnp.int8)                              # exact {0,1} storage
    deg = adj_i8.sum(axis=2, dtype=jnp.int32)                  # (R, N) in-degree
    inv_deg = 1.0 / jnp.maximum(deg, 1).astype(jnp.float32)

    a_p = jnp.pad(adj_i8, ((0, 0), (0, n_pad - N), (0, n_pad - N)))
    inv_p = jnp.pad(inv_deg, ((0, 0), (0, n_pad - N)))[..., None]      # (R, Np, 1)
    x_p = jnp.pad(x.astype(jnp.bfloat16),
                  ((0, n_pad - N), (0, f_in_pad - F_in)))
    w_p = jnp.pad(rel_weights.astype(jnp.bfloat16),
                  ((0, 0), (0, f_in_pad - F_in), (0, f_out_pad - F_out)))
    # Self-loop + bias computed exactly in f32 here (removes two blocks, one
    # matmul and a dynamic slice from the kernel).
    init = (x.astype(jnp.float32) @ loop_weight.astype(jnp.float32)
            + h_bias.astype(jnp.float32)[None, :])
    init_p = jnp.pad(init, ((0, n_pad - N), (0, f_out_pad - F_out)))

    # ---- VMEM budget (double-buffer pipelined blocks) ------------------------
    vmem_est = (2 * tm * ts * 1                   # int8 A chunk
                + 2 * tm * 4                      # 1/deg column
                + 2 * ts * f_in_pad * 2           # bf16 X chunk
                + 2 * f_in_pad * f_out_pad * 2    # bf16 W_r
                + 2 * tm * f_out_pad * 4          # f32 init tile
                + 2 * tm * f_out_pad * 4          # f32 output tile
                + tm * f_in_pad * 4)              # f32 msg scratch
    try:
        cap = int(pltpu.get_tpu_info().vmem_capacity_bytes)
    except Exception:
        cap = 64 * 1024 * 1024                    # safe for every generation
    vmem_limit = int(min(int(0.85 * cap),
                         max(32 * 1024 * 1024, int(1.5 * vmem_est))))

    grid_spec = pltpu.PrefetchScalarGridSpec(
        num_scalar_prefetch=0,
        grid=(num_m, R, num_s),                    # reductions (r, s) innermost
        in_specs=[
            pl.BlockSpec((None, tm, ts), lambda i, r, s: (r, i, s)),       # A_r chunk
            pl.BlockSpec((None, tm, 1), lambda i, r, s: (r, i, 0)),        # 1/deg
            pl.BlockSpec((ts, f_in_pad), lambda i, r, s: (s, 0)),          # X chunk
            pl.BlockSpec((None, f_in_pad, f_out_pad),
                         lambda i, r, s: (r, 0, 0)),                       # W_r
            pl.BlockSpec((tm, f_out_pad), lambda i, r, s: (i, 0)),         # init
        ],
        out_specs=pl.BlockSpec((tm, f_out_pad), lambda i, r, s: (i, 0)),
        scratch_shapes=[pltpu.VMEM((tm, f_in_pad), jnp.float32)],
    )

    out = pl.pallas_call(
        _rgcn_kernel,
        out_shape=jax.ShapeDtypeStruct((n_pad, f_out_pad), jnp.float32),
        grid_spec=grid_spec,
        compiler_params=pltpu.CompilerParams(
            dimension_semantics=("parallel", "arbitrary", "arbitrary"),
            vmem_limit_bytes=vmem_limit,
        ),
    )(a_p, inv_p, x_p, w_p, init_p)

    return out[:N, :F_out].astype(x.dtype)


# ----------------------------------------------------------------------------
# Pure-JAX reference for correctness checking (full f32 math).
# ----------------------------------------------------------------------------
def rel_graph_conv_layer_ref(adj, x, rel_weights, loop_weight, h_bias):
    in_deg = jnp.clip(adj.sum(axis=2, keepdims=True), 1.0, None)   # (R, N, 1)
    adj_norm = adj / in_deg
    h = jnp.einsum("rds,sf->rdf", adj_norm, x)          # aggregate per relation
    h = jnp.einsum("rdf,rfo->do", h, rel_weights)       # per-rel weight + rel sum
    h = h + x @ loop_weight                             # self loop
    h = h + h_bias                                      # bias
    return jnp.maximum(h, 0.0)                          # ReLU (dropout = identity)


if __name__ == "__main__":
    key = jax.random.PRNGKey(0)
    N = 16          # number of nodes
    F_in = 32       # in_feat
    F_out = 64      # out_feat
    R = 3           # len(rel_names)
    B = 2           # num_bases (< R  -> use weight basis)

    k_adj, k_x, k_basis, k_comp, k_loop, k_bias = jax.random.split(key, 6)

    # dense per-relation adjacency A[r, dst, src] in {0, 1}
    adj = jax.random.bernoulli(k_adj, p=0.3, shape=(R, N, N)).astype(jnp.float32)

    # node features
    x = jax.random.normal(k_x, (N, F_in), dtype=jnp.float32)

    # WeightBasis: basis (B, F_in, F_out), coefficients w_comp (R, B)
    basis = jax.random.normal(k_basis, (B, F_in, F_out), dtype=jnp.float32) * 0.1
    w_comp = jax.random.normal(k_comp, (R, B), dtype=jnp.float32)
    rel_weights = jnp.einsum("rb,bio->rio", w_comp, basis)          # (R, F_in, F_out)

    # self-loop weight and bias
    loop_weight = jax.random.normal(k_loop, (F_in, F_out), dtype=jnp.float32) * 0.1
    h_bias = jax.random.normal(k_bias, (F_out,), dtype=jnp.float32) * 0.01

    out = rel_graph_conv_layer(adj, x, rel_weights, loop_weight, h_bias)
    out = jax.block_until_ready(out)

    ref = rel_graph_conv_layer_ref(adj, x, rel_weights, loop_weight, h_bias)
    assert out.shape == (N, F_out)
    # Relation-path matmuls run in bf16 (f32 accumulation), so tolerance is
    # relaxed relative to the full-f32 reference.
    assert jnp.allclose(out, ref, atol=2e-2, rtol=2e-2), "mismatch vs reference"

    print("KERNEL_OK")
</pallas_src>

<mosaic_0001>
module attributes {stable_mosaic.version = 11 : i64} {
  func.func @_rgcn_kernel(%arg0: i32, %arg1: i32, %arg2: i32, %arg3: memref<1x128x128xi8, #tpu.memory_space<vmem>>, %arg4: memref<1x128x1xf32, #tpu.memory_space<vmem>>, %arg5: memref<128x128xbf16, #tpu.memory_space<vmem>>, %arg6: memref<1x128x128xbf16, #tpu.memory_space<vmem>>, %arg7: memref<128x128xf32, #tpu.memory_space<vmem>>, %arg8: memref<128x128xf32, #tpu.memory_space<vmem>>, %arg9: memref<128x128xf32, #tpu.memory_space<vmem>>) attributes {dimension_semantics = [#tpu.dimension_semantics<parallel>, #tpu.dimension_semantics<arbitrary>, #tpu.dimension_semantics<arbitrary>], iteration_bounds = array<i64: 1, 3, 1>, scalar_prefetch = 0 : i64, scratch_operands = 1 : i64, tpu.core_type = #tpu.core_type<tc>, window_params = [{transform_indices = @transform_0, window_bounds = array<i64: 1, 128, 128>}, {transform_indices = @transform_1, window_bounds = array<i64: 1, 128, 1>}, {transform_indices = @transform_2, window_bounds = array<i64: 128, 128>}, {transform_indices = @transform_3, window_bounds = array<i64: 1, 128, 128>}, {transform_indices = @transform_4, window_bounds = array<i64: 128, 128>}, {transform_indices = @transform_5, window_bounds = array<i64: 128, 128>}]} {
    %c0_i32 = arith.constant 0 : i32
    %0 = arith.cmpi eq, %arg1, %c0_i32 : i32
    %c0_i32_0 = arith.constant 0 : i32
    %1 = arith.cmpi eq, %arg2, %c0_i32_0 : i32
    %2 = arith.andi %0, %1 : i1
    %3 = arith.extui %2 : i1 to i32
    %c0_i32_1 = arith.constant 0 : i32
    %4 = arith.cmpi ne, %3, %c0_i32_1 : i32
    scf.if %4 {
      %c0_16 = arith.constant 0 : index
      %c0_17 = arith.constant 0 : index
      %24 = vector.load %arg7[%c0_16, %c0_17] : memref<128x128xf32, #tpu.memory_space<vmem>>, vector<128x128xf32>
      %c0_18 = arith.constant 0 : index
      %c0_19 = arith.constant 0 : index
      %25 = vector.load %arg8[%c0_18, %c0_19] : memref<128x128xf32, #tpu.memory_space<vmem>>, vector<128x128xf32>
      tpu.vector_store %arg8[%c0_18, %c0_19], %24 {strides = array<i32>} : memref<128x128xf32, #tpu.memory_space<vmem>>, vector<128x128xf32>,
    } else {
    }
    %c0_i32_2 = arith.constant 0 : i32
    %5 = arith.cmpi eq, %arg2, %c0_i32_2 : i32
    %6 = arith.extui %5 : i1 to i32
    %c0_i32_3 = arith.constant 0 : i32
    %7 = arith.cmpi ne, %6, %c0_i32_3 : i32
    scf.if %7 {
      %cst_16 = arith.constant 0.000000e+00 : f32
      %24 = vector.broadcast %cst_16 : f32 to vector<128x128xf32>
      %c0_17 = arith.constant 0 : index
      %c0_18 = arith.constant 0 : index
      %25 = vector.load %arg9[%c0_17, %c0_18] : memref<128x128xf32, #tpu.memory_space<vmem>>, vector<128x128xf32>
      tpu.vector_store %arg9[%c0_17, %c0_18], %24 {strides = array<i32>} : memref<128x128xf32, #tpu.memory_space<vmem>>, vector<128x128xf32>,
    } else {
    }
    %c0 = arith.constant 0 : index
    %c0_4 = arith.constant 0 : index
    %c0_5 = arith.constant 0 : index
    %8 = vector.load %arg3[%c0, %c0_4, %c0_5] : memref<1x128x128xi8, #tpu.memory_space<vmem>>, vector<1x128x128xi8>
    %9 = vector.shape_cast %8 : vector<1x128x128xi8> to vector<128x128xi8>
    %10 = arith.sitofp %9 : vector<128x128xi8> to vector<128x128xbf16>
    %c0_6 = arith.constant 0 : index
    %c0_7 = arith.constant 0 : index
    %11 = vector.load %arg9[%c0_6, %c0_7] : memref<128x128xf32, #tpu.memory_space<vmem>>, vector<128x128xf32>
    %c0_8 = arith.constant 0 : index
    %c0_9 = arith.constant 0 : index
    %12 = vector.load %arg5[%c0_8, %c0_9] : memref<128x128xbf16, #tpu.memory_space<vmem>>, vector<128x128xbf16>
    %cst = arith.constant dense<0.000000e+00> : vector<128x128xf32>
    %13 = tpu.matmul %10, %12, %cst {dimension_numbers = #tpu.dot_dimension_numbers<[1], [0], [0], [1], [0, 0, 1, 1], [], []>} : vector<128x128xbf16>, vector<128x128xbf16>, vector<128x128xf32> -> vector<128x128xf32>
    %14 = arith.addf %11, %13 : vector<128x128xf32>
    %c0_10 = arith.constant 0 : index
    %c0_11 = arith.constant 0 : index
    %15 = vector.load %arg9[%c0_10, %c0_11] : memref<128x128xf32, #tpu.memory_space<vmem>>, vector<128x128xf32>
    tpu.vector_store %arg9[%c0_10, %c0_11], %14 {strides = array<i32>} : memref<128x128xf32, #tpu.memory_space<vmem>>, vector<128x128xf32>,
    %c0_i32_12 = arith.constant 0 : i32
    %16 = arith.cmpi eq, %arg2, %c0_i32_12 : i32
    %17 = arith.extui %16 : i1 to i32
    %c0_i32_13 = arith.constant 0 : i32
    %18 = arith.cmpi ne, %17, %c0_i32_13 : i32
    scf.if %18 {
      %c0_16 = arith.constant 0 : index
      %c0_17 = arith.constant 0 : index
      %24 = vector.load %arg9[%c0_16, %c0_17] : memref<128x128xf32, #tpu.memory_space<vmem>>, vector<128x128xf32>
      %c0_18 = arith.constant 0 : index
      %c0_19 = arith.constant 0 : index
      %c0_20 = arith.constant 0 : index
      %25 = vector.load %arg4[%c0_18, %c0_19, %c0_20] : memref<1x128x1xf32, #tpu.memory_space<vmem>>, vector<1x128x1xf32>
      %26 = vector.shape_cast %25 : vector<1x128x1xf32> to vector<128x1xf32>
      %27 = vector.broadcast %26 : vector<128x1xf32> to vector<128x128xf32>
      %28 = arith.mulf %24, %27 : vector<128x128xf32>
      %29 = arith.truncf %28 : vector<128x128xf32> to vector<128x128xbf16>
      %c0_21 = arith.constant 0 : index
      %c0_22 = arith.constant 0 : index
      %30 = vector.load %arg8[%c0_21, %c0_22] : memref<128x128xf32, #tpu.memory_space<vmem>>, vector<128x128xf32>
      %c0_23 = arith.constant 0 : index
      %c0_24 = arith.constant 0 : index
      %c0_25 = arith.constant 0 : index
      %31 = vector.load %arg6[%c0_23, %c0_24, %c0_25] : memref<1x128x128xbf16, #tpu.memory_space<vmem>>, vector<1x128x128xbf16>
      %32 = vector.shape_cast %31 : vector<1x128x128xbf16> to vector<128x128xbf16>
      %cst_26 = arith.constant dense<0.000000e+00> : vector<128x128xf32>
      %33 = tpu.matmul %29, %32, %cst_26 {dimension_numbers = #tpu.dot_dimension_numbers<[1], [0], [0], [1], [0, 0, 1, 1], [], []>} : vector<128x128xbf16>, vector<128x128xbf16>, vector<128x128xf32> -> vector<128x128xf32>
      %34 = arith.addf %30, %33 : vector<128x128xf32>
      %c0_27 = arith.constant 0 : index
      %c0_28 = arith.constant 0 : index
      %35 = vector.load %arg8[%c0_27, %c0_28] : memref<128x128xf32, #tpu.memory_space<vmem>>, vector<128x128xf32>
      tpu.vector_store %arg8[%c0_27, %c0_28], %34 {strides = array<i32>} : memref<128x128xf32, #tpu.memory_space<vmem>>, vector<128x128xf32>,
    } else {
    }
    %c2_i32 = arith.constant 2 : i32
    %19 = arith.cmpi eq, %arg1, %c2_i32 : i32
    %c0_i32_14 = arith.constant 0 : i32
    %20 = arith.cmpi eq, %arg2, %c0_i32_14 : i32
    %21 = arith.andi %19, %20 : i1
    %22 = arith.extui %21 : i1 to i32
    %c0_i32_15 = arith.constant 0 : i32
    %23 = arith.cmpi ne, %22, %c0_i32_15 : i32
    scf.if %23 {
      %c0_16 = arith.constant 0 : index
      %c0_17 = arith.constant 0 : index
      %24 = vector.load %arg8[%c0_16, %c0_17] : memref<128x128xf32, #tpu.memory_space<vmem>>, vector<128x128xf32>
      %cst_18 = arith.constant 0.000000e+00 : f32
      %25 = vector.broadcast %cst_18 : f32 to vector<128x128xf32>
      %26 = arith.maximumf %24, %25 : vector<128x128xf32>
      %c0_19 = arith.constant 0 : index
      %c0_20 = arith.constant 0 : index
      %27 = vector.load %arg8[%c0_19, %c0_20] : memref<128x128xf32, #tpu.memory_space<vmem>>, vector<128x128xf32>
      tpu.vector_store %arg8[%c0_19, %c0_20], %26 {strides = array<i32>} : memref<128x128xf32, #tpu.memory_space<vmem>>, vector<128x128xf32>,
    } else {
    }
    return
  }
  func.func @transform_0(%arg0: i32, %arg1: i32, %arg2: i32) -> (i32, i32, i32) {
    %c0_i32 = arith.constant 0 : i32
    return %arg1, %arg0, %arg2 : i32, i32, i32
  }
  func.func @transform_1(%arg0: i32, %arg1: i32, %arg2: i32) -> (i32, i32, i32) {
    %c0_i32 = arith.constant 0 : i32
    %c0_i32_0 = arith.constant 0 : i32
    return %arg1, %arg0, %c0_i32 : i32, i32, i32
  }
  func.func @transform_2(%arg0: i32, %arg1: i32, %arg2: i32) -> (i32, i32) {
    %c0_i32 = arith.constant 0 : i32
    %c0_i32_0 = arith.constant 0 : i32
    return %arg2, %c0_i32 : i32, i32
  }
  func.func @transform_3(%arg0: i32, %arg1: i32, %arg2: i32) -> (i32, i32, i32) {
    %c0_i32 = arith.constant 0 : i32
    %c0_i32_0 = arith.constant 0 : i32
    %c0_i32_1 = arith.constant 0 : i32
    return %arg1, %c0_i32, %c0_i32_0 : i32, i32, i32
  }
  func.func @transform_4(%arg0: i32, %arg1: i32, %arg2: i32) -> (i32, i32) {
    %c0_i32 = arith.constant 0 : i32
    %c0_i32_0 = arith.constant 0 : i32
    return %arg0, %c0_i32 : i32, i32
  }
  func.func @transform_5(%arg0: i32, %arg1: i32, %arg2: i32) -> (i32, i32) {
    %c0_i32 = arith.constant 0 : i32
    %c0_i32_0 = arith.constant 0 : i32
    return %arg0, %c0_i32 : i32, i32
  }
}

</mosaic_0001>

<llo_original>
// kernel: tpu_custom_call.1
$region0: #{tpu_custom_call.1}
  #allocation0 [shape = 'u32[]', space=smem, size = 0x4, offset = 0x4, fixed_abs, tag = 'smem constant byte address 0x4 - core index']
  #allocation1 [shape = 'u32[144,128]{1,0:T(1,128)}', space=vmem, size = 0x12000, scoped, tag = 'internal scratch']
  #allocation2 [shape = 'f32[128,128]{1,0:T(8,128)}', space=vmem, size = 0x10000, scoped, tag = 'scratch operand']
  %s0 = inlined_call_operand.hbm [shape: s8[3,128,128], index: 0, kind: input, shape index: {}]
  %s1 = inlined_call_operand.vmem [shape: f32[3,128,1], index: 1, kind: input, shape index: {}]
  %s2 = inlined_call_operand.vmem [shape: bf16[128,128], index: 2, kind: input, shape index: {}]
  %s3 = inlined_call_operand.vmem [shape: bf16[3,128,128], index: 3, kind: input, shape index: {}]
  %s4 = inlined_call_operand.vmem [shape: f32[128,128], index: 4, kind: input, shape index: {}]
  %s5 = inlined_call_operand.hbm [shape: f32[128,128], index: 5, kind: output, shape index: {}]
  %s6 = sld [smem:[#allocation0]]
  $region73: #{tpu_custom_call.1} parent=0
    _
  %s8 = ssub.s32 1, %s6
  %s9 = scalar_select 0, %s8, %s6
  $region1: #{tpu_custom_call.1} parent=0
    #allocation3 [shape = 'u8[32768]{0}', space=vmem, size = 0x8000, scoped, tag = 'input window, operand 0']
    #allocation4 [shape = 's32[2]{0}', space=sflag, size = 0x8, scoped, tag = 'scoped memory for tpu_custom_call.1']
    #allocation5 [shape = 's32[2]{0}', space=sflag, size = 0x8, scoped, tag = 'scoped memory for tpu_custom_call.1']
    #allocation6 [shape = 'u8[65536]{0}', space=vmem, size = 0x10000, scoped, tag = 'output window, operand 0, single buffered']
    %10 = vsyncpa [#allocation4], 0
    %s11 = scalar_lea.sflag [#allocation4], 1
    %12 = vsyncpa %s11, 0
    %13 = vsyncpa [#allocation5], 0
    loop: start=0, step=1, limit=5
    $region2: #{tpu_custom_call.1} parent=1 // loop_pre_header
      _
    $region3: #{tpu_custom_call.1} parent=1 // loop_header
      %s15 = sphi 0, %s19
      %p16 = scmp.ge.s32.totalorder %s15, 5
      %s22 = sphi 0, %s41
      %s23 = sphi 0, %s37
      %s24 = sphi 0, %s33
      %s25 = sphi 0, %s22
      %s26 = sphi 0, %s23
      %s27 = sphi 0, %s24
      %s28 = sphi 0, %s25
      %s29 = sphi 0, %s26
      %s30 = sphi 0, %s27
      %s48 = sphi 0, %s50
      %s51 = sphi 0, %s48
      %s52 = sphi 0, %s51
      %s68 = sphi 0, %s52
      %s76 = sphi 0, %s78
      %s79 = sphi 0, %s76
      %s80 = sphi 0, %s79
      %s96 = sphi 0, %s80
      %s102 = sphi 0, %s104
      %s105 = sphi 0, %s102
      %s106 = sphi 0, %s105
      %s122 = sphi 0, %s106
      %s128 = sphi 0, %s130
      %s131 = sphi 0, %s128
      %s132 = sphi 0, %s131
      %s148 = sphi 0, %s132
      %s154 = sphi 0, %s156
      %s157 = sphi 0, %s154
      %s158 = sphi 0, %s157
      %s174 = sphi 0, %s158
      %s180 = sphi 0, %s182
      %s183 = sphi 0, %s180
      %s184 = sphi 0, %s183
      %s200 = sphi 0, %s184
    $region4: #{tpu_custom_call.1} parent=1 // loop_header_branch
      %18 = sbr.rel (%p16) target = $region8
    $region5: #{tpu_custom_call.1} parent=1 // loop_body
      %s20 = ssub.s32 %s15, 1
      %s21 = ssub.s32 %s15, 2
      %s31 = sadd.s32 1, %s24
      %p32 = scmp.ge.s32.totalorder %s31, 1
      %s33 = scalar_select %p32, 0, %s31
      %s34 = sadd.s32 1, %s23
      %s35 = scalar_select %p32, %s34, %s23
      %p36 = scmp.ge.s32.totalorder %s35, 3
      %s37 = scalar_select %p36, 0, %s35
      %s38 = sadd.s32 1, %s22
      %s39 = scalar_select %p36, %s38, %s22
      %p40 = scmp.ge.s32.totalorder %s39, 1
      %s41 = scalar_select %p40, 0, %s39
      %s42 = ssub.s32 %s23, %s37
      %s43 = ssub.s32 %s22, %s41
      %s44 = sor.u32 %s42, %s43
      %s45 = ssub.s32 %s24, %s33
      %s46 = sor.u32 %s44, %s45
      %p47 = scmp.eq.s32.totalorder %s46, 0
      %s49 = sadd.s32 %s48, 1
      %s50 = scalar_select %p47, %s48, %s49
      %p53 = pneg %p47
      %p54 = scmp.eq.s32.totalorder %s15, 2
      %p55 = por %p53, %p54
      %p56 = scmp.ne.s32.totalorder %s48, %s51
      %p57 = scmp.eq.s32.totalorder %s15, 0
      %p58 = por %p56, %p57
      %p59 = scmp.ne.s32.totalorder %s48, %s51
      %p60 = scmp.eq.s32.totalorder %s20, 2
      %p61 = por %p59, %p60
      %p62 = scmp.ne.s32.totalorder %s51, %s52
      %p63 = scmp.eq.s32.totalorder %s20, 0
      %p64 = por %p62, %p63
      %p65 = scmp.ne.s32.totalorder %s51, %s52
      %p66 = scmp.eq.s32.totalorder %s21, 2
      %p67 = por %p65, %p66
      %p69 = scmp.ne.s32.totalorder %s52, %s68
      %p70 = scmp.eq.s32.totalorder %s21, 0
      %p71 = por %p69, %p70
      %s72 = ssub.s32 %s23, %s37
      %s73 = ssub.s32 %s22, %s41
      %s74 = sor.u32 %s72, %s73
      %p75 = scmp.eq.s32.totalorder %s74, 0
      %s77 = sadd.s32 %s76, 1
      %s78 = scalar_select %p75, %s76, %s77
      %p81 = pneg %p75
      %p82 = scmp.eq.s32.totalorder %s15, 2
      %p83 = por %p81, %p82
      %p84 = scmp.ne.s32.totalorder %s76, %s79
      %p85 = scmp.eq.s32.totalorder %s15, 0
      %p86 = por %p84, %p85
      %p87 = scmp.ne.s32.totalorder %s76, %s79
      %p88 = scmp.eq.s32.totalorder %s20, 2
      %p89 = por %p87, %p88
      %p90 = scmp.ne.s32.totalorder %s79, %s80
      %p91 = scmp.eq.s32.totalorder %s20, 0
      %p92 = por %p90, %p91
      %p93 = scmp.ne.s32.totalorder %s79, %s80
      %p94 = scmp.eq.s32.totalorder %s21, 2
      %p95 = por %p93, %p94
      %p97 = scmp.ne.s32.totalorder %s80, %s96
      %p98 = scmp.eq.s32.totalorder %s21, 0
      %p99 = por %p97, %p98
      %s100 = ssub.s32 %s24, %s33
      %p101 = scmp.eq.s32.totalorder %s100, 0
      %s103 = sadd.s32 %s102, 1
      %s104 = scalar_select %p101, %s102, %s103
      %p107 = pneg %p101
      %p108 = scmp.eq.s32.totalorder %s15, 2
      %p109 = por %p107, %p108
      %p110 = scmp.ne.s32.totalorder %s102, %s105
      %p111 = scmp.eq.s32.totalorder %s15, 0
      %p112 = por %p110, %p111
      %p113 = scmp.ne.s32.totalorder %s102, %s105
      %p114 = scmp.eq.s32.totalorder %s20, 2
      %p115 = por %p113, %p114
      %p116 = scmp.ne.s32.totalorder %s105, %s106
      %p117 = scmp.eq.s32.totalorder %s20, 0
      %p118 = por %p116, %p117
      %p119 = scmp.ne.s32.totalorder %s105, %s106
      %p120 = scmp.eq.s32.totalorder %s21, 2
      %p121 = por %p119, %p120
      %p123 = scmp.ne.s32.totalorder %s106, %s122
      %p124 = scmp.eq.s32.totalorder %s21, 0
      %p125 = por %p123, %p124
      %s126 = ssub.s32 %s23, %s37
      %p127 = scmp.eq.s32.totalorder %s126, 0
      %s129 = sadd.s32 %s128, 1
      %s130 = scalar_select %p127, %s128, %s129
      %p133 = pneg %p127
      %p134 = scmp.eq.s32.totalorder %s15, 2
      %p135 = por %p133, %p134
      %p136 = scmp.ne.s32.totalorder %s128, %s131
      %p137 = scmp.eq.s32.totalorder %s15, 0
      %p138 = por %p136, %p137
      %p139 = scmp.ne.s32.totalorder %s128, %s131
      %p140 = scmp.eq.s32.totalorder %s20, 2
      %p141 = por %p139, %p140
      %p142 = scmp.ne.s32.totalorder %s131, %s132
      %p143 = scmp.eq.s32.totalorder %s20, 0
      %p144 = por %p142, %p143
      %p145 = scmp.ne.s32.totalorder %s131, %s132
      %p146 = scmp.eq.s32.totalorder %s21, 2
      %p147 = por %p145, %p146
      %p149 = scmp.ne.s32.totalorder %s132, %s148
      %p150 = scmp.eq.s32.totalorder %s21, 0
      %p151 = por %p149, %p150
      %s152 = ssub.s32 %s22, %s41
      %p153 = scmp.eq.s32.totalorder %s152, 0
      %s155 = sadd.s32 %s154, 1
      %s156 = scalar_select %p153, %s154, %s155
      %p159 = pneg %p153
      %p160 = scmp.eq.s32.totalorder %s15, 2
      %p161 = por %p159, %p160
      %p162 = scmp.ne.s32.totalorder %s154, %s157
      %p163 = scmp.eq.s32.totalorder %s15, 0
      %p164 = por %p162, %p163
      %p165 = scmp.ne.s32.totalorder %s154, %s157
      %p166 = scmp.eq.s32.totalorder %s20, 2
      %p167 = por %p165, %p166
      %p168 = scmp.ne.s32.totalorder %s157, %s158
      %p169 = scmp.eq.s32.totalorder %s20, 0
      %p170 = por %p168, %p169
      %p171 = scmp.ne.s32.totalorder %s157, %s158
      %p172 = scmp.eq.s32.totalorder %s21, 2
      %p173 = por %p171, %p172
      %p175 = scmp.ne.s32.totalorder %s158, %s174
      %p176 = scmp.eq.s32.totalorder %s21, 0
      %p177 = por %p175, %p176
      %s178 = ssub.s32 %s22, %s41
      %p179 = scmp.eq.s32.totalorder %s178, 0
      %s181 = sadd.s32 %s180, 1
      %s182 = scalar_select %p179, %s180, %s181
      %p185 = pneg %p179
      %p186 = scmp.eq.s32.totalorder %s15, 2
      %p187 = por %p185, %p186
      %p188 = scmp.ne.s32.totalorder %s180, %s183
      %p189 = scmp.eq.s32.totalorder %s15, 0
      %p190 = por %p188, %p189
      %p191 = scmp.ne.s32.totalorder %s180, %s183
      %p192 = scmp.eq.s32.totalorder %s20, 2
      %p193 = por %p191, %p192
      %p194 = scmp.ne.s32.totalorder %s183, %s184
      %p195 = scmp.eq.s32.totalorder %s20, 0
      %p196 = por %p194, %p195
      %p197 = scmp.ne.s32.totalorder %s183, %s184
      %p198 = scmp.eq.s32.totalorder %s21, 2
      %p199 = por %p197, %p198
      %p201 = scmp.ne.s32.totalorder %s184, %s200
      %p202 = scmp.eq.s32.totalorder %s21, 0
      %p203 = por %p201, %p202
      %p204 = scmp.le.s32.totalorder 1, %s15
      %p205 = scmp.lt.s32.totalorder %s15, 4
      %p206 = pnand %p204, %p205
      %p207 = pneg %p206
      // Predicated region
      $region9: #{tpu_custom_call.1} parent=5 // pred_check
        _
      $region10: #{tpu_custom_call.1} parent=5 // pred_check_branch
        %209 = sbr.rel (%p206) target = $region12
      $region11: #{tpu_custom_call.1} parent=5 // pred_region
        %s210 = ssub.s32 %s15, 1
        // Predicated region
        $region13: #{tpu_custom_call.1} parent=11 // pred_check
          %p211 = pneg %p118
        $region14: #{tpu_custom_call.1} parent=11 // pred_check_branch
          %213 = sbr.rel (%p211) target = $region16
        $region15: #{tpu_custom_call.1} parent=11 // pred_region
          %s214 = smul.u32 16, %s27
          %p215 = scmp.lt.s32.totalorder %s214, 15
          %s216 = scalar_select %p215, %s214, 15
          %s217 = smul.addr %s216, 4
          %s218 = scalar_lea.vmem %s2, %s217
          %s219 = smul.u32 16, %s27
        $region16: #{tpu_custom_call.1} parent=11 // pred_fallthru
          _
        // Predicated region
        $region17: #{tpu_custom_call.1} parent=11 // pred_check
          %p220 = pneg %p170
        $region18: #{tpu_custom_call.1} parent=11 // pred_check_branch
          %222 = sbr.rel (%p220) target = $region20
        $region19: #{tpu_custom_call.1} parent=11 // pred_region
          %s223 = smul.u32 16, %s25
          %p224 = scmp.lt.s32.totalorder %s223, 15
          %s225 = scalar_select %p224, %s223, 15
          %s226 = smul.addr %s225, 8
          %s227 = scalar_lea.vmem %s4, %s226
          %s228 = smul.u32 16, %s25
        $region20: #{tpu_custom_call.1} parent=11 // pred_fallthru
          _
      $region12: #{tpu_custom_call.1} parent=5 // pred_fallthru
        _
      %p229 = scmp.lt.s32.totalorder %s15, 3
      // Predicated region
      $region21: #{tpu_custom_call.1} parent=5 // pred_check
        %p230 = pneg %p229
      $region22: #{tpu_custom_call.1} parent=5 // pred_check_branch
        %232 = sbr.rel (%p230) target = $region24
      $region23: #{tpu_custom_call.1} parent=5 // pred_region
        // Predicated region
        $region25: #{tpu_custom_call.1} parent=23 // pred_check
          %p233 = pneg %p58
        $region26: #{tpu_custom_call.1} parent=23 // pred_check_branch
          %235 = sbr.rel (%p233) target = $region28
        $region27: #{tpu_custom_call.1} parent=23 // pred_region
          %s236 = sand.u32 %s48, 1
          %s237 = scalar_lea.sflag [#allocation4], %s236
          %s238 = sand.u32 %s48, 1
          %s239 = smul.addr %s238, 32
          %s240 = scalar_lea.vmem [#allocation3], %s239
          %s241 = smul.u32 4, %s22
          %s243 = ssub.s32 512, 512
          %244 = vsyncadd %s237, %s243
          %s245 = sadd.s32 %s24, %s241
          %s246 = smul.addr %s23, 4
          %s247 = sadd.s32 %s245, %s246
          %s248 = smul.addr %s247, 128
          %s249 = scalar_lea.hbm %s0, %s248
          %s250 = sshll.u32 %s240, 4
          %s251 = int_to_ptr.vmem [resolvable:$true] %s250
          %256 = dma.hbm_to_vmem [thread:$0]  %s249, 512, %s251, %s237, 128, 128, 8
        $region28: #{tpu_custom_call.1} parent=23 // pred_fallthru
          _
        // Predicated region
        $region29: #{tpu_custom_call.1} parent=23 // pred_check
          %p257 = pneg %p86
        $region30: #{tpu_custom_call.1} parent=23 // pred_check_branch
          %259 = sbr.rel (%p257) target = $region32
        $region31: #{tpu_custom_call.1} parent=23 // pred_region
          %s260 = smul.u32 16, %s22
          %p261 = scmp.lt.s32.totalorder %s23, 2
          %s262 = scalar_select %p261, %s23, 2
          %p263 = scmp.lt.s32.totalorder %s260, 15
          %s264 = scalar_select %p263, %s260, 15
          %s265 = smul.addr %s262, 16
          %s266 = sadd.s32 %s264, %s265
          %s267 = smul.addr %s266, 8
          %s268 = scalar_lea.vmem %s1, %s267
          %s269 = smul.u32 16, %s22
        $region32: #{tpu_custom_call.1} parent=23 // pred_fallthru
          _
        // Predicated region
        $region33: #{tpu_custom_call.1} parent=23 // pred_check
          %p270 = pneg %p138
        $region34: #{tpu_custom_call.1} parent=23 // pred_check_branch
          %272 = sbr.rel (%p270) target = $region36
        $region35: #{tpu_custom_call.1} parent=23 // pred_region
          %p273 = scmp.lt.s32.totalorder %s23, 2
          %s274 = scalar_select %p273, %s23, 2
          %s275 = smul.addr %s274, 16
          %s276 = smul.addr %s275, 4
          %s277 = scalar_lea.vmem %s3, %s276
        $region36: #{tpu_custom_call.1} parent=23 // pred_fallthru
          _
      $region24: #{tpu_custom_call.1} parent=5 // pred_fallthru
        _
      %p278 = scmp.le.s32.totalorder 1, %s15
      %p279 = scmp.lt.s32.totalorder %s15, 4
      %p280 = pnand %p278, %p279
      %p281 = pneg %p280
      // Predicated region
      $region37: #{tpu_custom_call.1} parent=5 // pred_check
        _
      $region38: #{tpu_custom_call.1} parent=5 // pred_check_branch
        %283 = sbr.rel (%p280) target = $region40
      $region39: #{tpu_custom_call.1} parent=5 // pred_region
        %s284 = ssub.s32 %s15, 1
        %s285 = sand.u32 %s51, 1
        %s286 = scalar_lea.sflag [#allocation4], %s285
        %s287 = sand.u32 %s51, 1
        %s288 = smul.addr %s287, 32
        %s289 = scalar_lea.vmem [#allocation3], %s288
        // Predicated region
        $region41: #{tpu_custom_call.1} parent=39 // pred_check
          %p290 = pneg %p64
        $region42: #{tpu_custom_call.1} parent=39 // pred_check_branch
          %292 = sbr.rel (%p290) target = $region44
        $region43: #{tpu_custom_call.1} parent=39 // pred_region
          %293 = dma.done %s286, 512
        $region44: #{tpu_custom_call.1} parent=39 // pred_fallthru
          _
        %s294 = sand.u32 %s51, 1
        %s295 = scalar_lea.sflag [#allocation4], %s294
        %s296 = sand.u32 %s51, 1
        %s297 = smul.addr %s296, 32
        %s298 = scalar_lea.vmem [#allocation3], %s297
        %p299 = pneg %p64
        %p300 = pneg %p61
        %s301 = smul.u32 16, %s25
        %p302 = scmp.lt.s32.totalorder %s26, 2
        %s303 = scalar_select %p302, %s26, 2
        %p304 = scmp.lt.s32.totalorder %s301, 15
        %s305 = scalar_select %p304, %s301, 15
        %s306 = smul.addr %s303, 16
        %s307 = sadd.s32 %s305, %s306
        %s308 = smul.addr %s307, 8
        %s309 = scalar_lea.vmem %s1, %s308
        %p310 = pneg %p92
        %p311 = pneg %p89
        %s312 = smul.u32 16, %s27
        %p313 = scmp.lt.s32.totalorder %s312, 15
        %s314 = scalar_select %p313, %s312, 15
        %s315 = smul.addr %s314, 4
        %s316 = scalar_lea.vmem %s2, %s315
        %p317 = pneg %p118
        %p318 = pneg %p115
        %p319 = scmp.lt.s32.totalorder %s26, 2
        %s320 = scalar_select %p319, %s26, 2
        %s321 = smul.addr %s320, 16
        %s322 = smul.addr %s321, 4
        %s323 = scalar_lea.vmem %s3, %s322
        %p324 = pneg %p144
        %p325 = pneg %p141
        %s326 = smul.u32 16, %s25
        %p327 = scmp.lt.s32.totalorder %s326, 15
        %s328 = scalar_select %p327, %s326, 15
        %s329 = smul.addr %s328, 8
        %s330 = scalar_lea.vmem %s4, %s329
        %p331 = pneg %p170
        %p332 = pneg %p167
        %p333 = pneg %p196
        %p334 = pneg %p193
        %s335 = smul.u32 4, %s25
        %s336 = smul.u32 16, %s25
        %p337 = scmp.lt.s32.totalorder %s26, 2
        %s338 = scalar_select %p337, %s26, 2
        %p339 = scmp.lt.s32.totalorder %s336, 15
        %s340 = scalar_select %p339, %s336, 15
        %s341 = smul.addr %s338, 16
        %s342 = sadd.s32 %s340, %s341
        %s343 = smul.addr %s342, 8
        %s344 = scalar_lea.vmem %s1, %s343
        %s345 = smul.u32 16, %s25
        %s346 = smul.u32 16, %s27
        %p347 = scmp.lt.s32.totalorder %s346, 15
        %s348 = scalar_select %p347, %s346, 15
        %s349 = smul.addr %s348, 4
        %s350 = scalar_lea.vmem %s2, %s349
        %s351 = smul.u32 16, %s27
        %p352 = scmp.lt.s32.totalorder %s26, 2
        %s353 = scalar_select %p352, %s26, 2
        %s354 = smul.addr %s353, 16
        %s355 = smul.addr %s354, 4
        %s356 = scalar_lea.vmem %s3, %s355
        %s357 = smul.u32 16, %s25
        %p358 = scmp.lt.s32.totalorder %s357, 15
        %s359 = scalar_select %p358, %s357, 15
        %s360 = smul.addr %s359, 8
        %s361 = scalar_lea.vmem %s4, %s360
        %s362 = smul.u32 16, %s25
        %s363 = smul.u32 16, %s25
        %p365 = scmp.eq.s32.totalorder %s26, 0
        %p366 = scmp.eq.s32.totalorder %s27, 0
        %p367 = pnand %p365, %p366
        %p368 = pneg %p367
        // Predicated region
        $region45: #{tpu_custom_call.1} parent=39 // pred_check
          _
        $region46: #{tpu_custom_call.1} parent=39 // pred_check_branch
          %370 = sbr.rel (%p367) target = $region48
        $region47: #{tpu_custom_call.1} parent=39 // pred_region
          %v371 = vld [vmem:[%s361] sm:$0xff]
          %v372 = vld [vmem:[%s361 + $0x8] sm:$0xff]
          %v373 = vld [vmem:[%s361 + $0x10] sm:$0xff]
          %v374 = vld [vmem:[%s361 + $0x18] sm:$0xff]
          %v375 = vld [vmem:[%s361 + $0x20] sm:$0xff]
          %v376 = vld [vmem:[%s361 + $0x28] sm:$0xff]
          %v377 = vld [vmem:[%s361 + $0x30] sm:$0xff]
          %v378 = vld [vmem:[%s361 + $0x38] sm:$0xff]
          %v379 = vld [vmem:[%s361 + $0x40] sm:$0xff]
          %v380 = vld [vmem:[%s361 + $0x48] sm:$0xff]
          %v381 = vld [vmem:[%s361 + $0x50] sm:$0xff]
          %v382 = vld [vmem:[%s361 + $0x58] sm:$0xff]
          %v383 = vld [vmem:[%s361 + $0x60] sm:$0xff]
          %v384 = vld [vmem:[%s361 + $0x68] sm:$0xff]
          %v385 = vld [vmem:[%s361 + $0x70] sm:$0xff]
          %v386 = vld [vmem:[%s361 + $0x78] sm:$0xff]
          %387 = vst [vmem:[#allocation6] sm:$0xff] %v371
          %388 = vst [vmem:[#allocation6 + $0x8] sm:$0xff] %v372
          %389 = vst [vmem:[#allocation6 + $0x10] sm:$0xff] %v373
          %390 = vst [vmem:[#allocation6 + $0x18] sm:$0xff] %v374
          %391 = vst [vmem:[#allocation6 + $0x20] sm:$0xff] %v375
          %392 = vst [vmem:[#allocation6 + $0x28] sm:$0xff] %v376
          %393 = vst [vmem:[#allocation6 + $0x30] sm:$0xff] %v377
          %394 = vst [vmem:[#allocation6 + $0x38] sm:$0xff] %v378
          %395 = vst [vmem:[#allocation6 + $0x40] sm:$0xff] %v379
          %396 = vst [vmem:[#allocation6 + $0x48] sm:$0xff] %v380
          %397 = vst [vmem:[#allocation6 + $0x50] sm:$0xff] %v381
          %398 = vst [vmem:[#allocation6 + $0x58] sm:$0xff] %v382
          %399 = vst [vmem:[#allocation6 + $0x60] sm:$0xff] %v383
          %400 = vst [vmem:[#allocation6 + $0x68] sm:$0xff] %v384
          %401 = vst [vmem:[#allocation6 + $0x70] sm:$0xff] %v385
          %402 = vst [vmem:[#allocation6 + $0x78] sm:$0xff] %v386
        $region48: #{tpu_custom_call.1} parent=39 // pred_fallthru
          _
        // Predicated region
        $region49: #{tpu_custom_call.1} parent=39 // pred_check
          %p403 = pneg %p366
        $region50: #{tpu_custom_call.1} parent=39 // pred_check_branch
          %405 = sbr.rel (%p403) target = $region52
        $region51: #{tpu_custom_call.1} parent=39 // pred_region
          %406 = vst [vmem:[#allocation2] sm:$0xff] 0.0
          %407 = vst [vmem:[#allocation2 + $0x8] sm:$0xff] 0.0
          %408 = vst [vmem:[#allocation2 + $0x10] sm:$0xff] 0.0
          %409 = vst [vmem:[#allocation2 + $0x18] sm:$0xff] 0.0
          %410 = vst [vmem:[#allocation2 + $0x20] sm:$0xff] 0.0
          %411 = vst [vmem:[#allocation2 + $0x28] sm:$0xff] 0.0
          %412 = vst [vmem:[#allocation2 + $0x30] sm:$0xff] 0.0
          %413 = vst [vmem:[#allocation2 + $0x38] sm:$0xff] 0.0
          %414 = vst [vmem:[#allocation2 + $0x40] sm:$0xff] 0.0
          %415 = vst [vmem:[#allocation2 + $0x48] sm:$0xff] 0.0
          %416 = vst [vmem:[#allocation2 + $0x50] sm:$0xff] 0.0
          %417 = vst [vmem:[#allocation2 + $0x58] sm:$0xff] 0.0
          %418 = vst [vmem:[#allocation2 + $0x60] sm:$0xff] 0.0
          %419 = vst [vmem:[#allocation2 + $0x68] sm:$0xff] 0.0
          %420 = vst [vmem:[#allocation2 + $0x70] sm:$0xff] 0.0
          %421 = vst [vmem:[#allocation2 + $0x78] sm:$0xff] 0.0
        $region52: #{tpu_custom_call.1} parent=39 // pred_fallthru
          _
        %v422 = vld [vmem:[%s289] sm:$0xff]
        %v423 = vld [vmem:[%s289 + $0x8] sm:$0xff]
        %v424 = vld [vmem:[%s289 + $0x10] sm:$0xff]
        %v425 = vld [vmem:[%s289 + $0x18] sm:$0xff]
        %v426 = vunpack.c.l.s8.bf16 %v422
        %v427 = vunpack.c.h.s8.bf16 %v422
        %v428 = vunpack.c.l.s8.bf16 %v423
        %v429 = vunpack.c.h.s8.bf16 %v423
        %v430 = vunpack.c.l.s8.bf16 %v424
        %v431 = vunpack.c.h.s8.bf16 %v424
        %v432 = vunpack.c.l.s8.bf16 %v425
        %v433 = vunpack.c.h.s8.bf16 %v425
        %v434 = vld [vmem:[#allocation2] sm:$0xff]
        %v435 = vld [vmem:[#allocation2 + $0x8] sm:$0xff]
        %v436 = vld [vmem:[#allocation2 + $0x10] sm:$0xff]
        %v437 = vld [vmem:[#allocation2 + $0x18] sm:$0xff]
        %v438 = vld [vmem:[#allocation2 + $0x20] sm:$0xff]
        %v439 = vld [vmem:[#allocation2 + $0x28] sm:$0xff]
        %v440 = vld [vmem:[#allocation2 + $0x30] sm:$0xff]
        %v441 = vld [vmem:[#allocation2 + $0x38] sm:$0xff]
        %v442 = vld [vmem:[#allocation2 + $0x40] sm:$0xff]
        %v443 = vld [vmem:[#allocation2 + $0x48] sm:$0xff]
        %v444 = vld [vmem:[#allocation2 + $0x50] sm:$0xff]
        %v445 = vld [vmem:[#allocation2 + $0x58] sm:$0xff]
        %v446 = vld [vmem:[#allocation2 + $0x60] sm:$0xff]
        %v447 = vld [vmem:[#allocation2 + $0x68] sm:$0xff]
        %v448 = vld [vmem:[#allocation2 + $0x70] sm:$0xff]
        %v449 = vld [vmem:[#allocation2 + $0x78] sm:$0xff]
        %v450 = vld [vmem:[%s350] sm:$0xf]
        %v451 = vld [vmem:[%s350 + $0x4] sm:$0xf]
        %v452 = vld [vmem:[%s350 + $0x8] sm:$0xf]
        %v453 = vld [vmem:[%s350 + $0xc] sm:$0xf]
        %v454 = vld [vmem:[%s350 + $0x10] sm:$0xf]
        %v455 = vld [vmem:[%s350 + $0x14] sm:$0xf]
        %v456 = vld [vmem:[%s350 + $0x18] sm:$0xf]
        %v457 = vld [vmem:[%s350 + $0x1c] sm:$0xf]
        %v458 = vld [vmem:[%s350 + $0x20] sm:$0xf]
        %v459 = vld [vmem:[%s350 + $0x24] sm:$0xf]
        %v460 = vld [vmem:[%s350 + $0x28] sm:$0xf]
        %v461 = vld [vmem:[%s350 + $0x2c] sm:$0xf]
        %v462 = vld [vmem:[%s350 + $0x30] sm:$0xf]
        %v463 = vld [vmem:[%s350 + $0x34] sm:$0xf]
        %v464 = vld [vmem:[%s350 + $0x38] sm:$0xf]
        %v465 = vld [vmem:[%s350 + $0x3c] sm:$0xf]
        %v482 = vunpack.c.l.b16 %v450
        %v483 = vunpack.c.l.b16 %v451
        %v484 = vunpack.c.l.b16 %v452
        %v485 = vunpack.c.l.b16 %v453
        %v486 = vunpack.c.l.b16 %v454
        %v487 = vunpack.c.l.b16 %v455
        %v488 = vunpack.c.l.b16 %v456
        %v489 = vunpack.c.l.b16 %v457
        %v490 = vunpack.c.l.b16 %v458
        %v491 = vunpack.c.l.b16 %v459
        %v492 = vunpack.c.l.b16 %v460
        %v493 = vunpack.c.l.b16 %v461
        %v494 = vunpack.c.l.b16 %v462
        %v495 = vunpack.c.l.b16 %v463
        %v496 = vunpack.c.l.b16 %v464
        %v497 = vunpack.c.l.b16 %v465
        %v498 = vpack.c.b16 %v483, %v482
        %v499 = vpack.c.b16 %v485, %v484
        %v500 = vpack.c.b16 %v487, %v486
        %v501 = vpack.c.b16 %v489, %v488
        %v502 = vpack.c.b16 %v491, %v490
        %v503 = vpack.c.b16 %v493, %v492
        %v504 = vpack.c.b16 %v495, %v494
        %v505 = vpack.c.b16 %v497, %v496
        %514 = vmatprep.subr.bf16.mxu0 0
        %515 = vmatpush1.bf16.msra.mxu0 %v505
        %516 = vmatprep.subr.bf16.mxu0 0
        %517 = vmatpush1.bf16.msra.mxu0 %v504
        %518 = vmatprep.subr.bf16.mxu0 0
        %519 = vmatpush1.bf16.msra.mxu0 %v503
        %520 = vmatprep.subr.bf16.mxu0 0
        %521 = vmatpush1.bf16.msra.mxu0 %v502
        %522 = vmatprep.subr.bf16.mxu0 0
        %523 = vmatpush1.bf16.msra.mxu0 %v501
        %524 = vmatprep.subr.bf16.mxu0 0
        %525 = vmatpush1.bf16.msra.mxu0 %v500
        %526 = vmatprep.subr.bf16.mxu0 0
        %527 = vmatpush1.bf16.msra.mxu0 %v499
        %528 = vmatprep.subr.bf16.mxu0 0
        %529 = vmatpush1.bf16.msra.mxu0 %v498
        %530 = vmatprep.subr.bf16.mxu0 0
        %531 = vmatpush2.bf16.msra.mxu0 0
        %532 = vmatprep.subr.bf16.mxu0 0
        %533 = vmatpush2.bf16.msra.mxu0 0
        %534 = vmatprep.subr.bf16.mxu0 0
        %535 = vmatpush2.bf16.msra.mxu0 0
        %536 = vmatprep.subr.bf16.mxu0 0
        %537 = vmatpush2.bf16.msra.mxu0 0
        %538 = vmatprep.subr.bf16.mxu0 0
        %539 = vmatpush2.bf16.msra.mxu0 0
        %540 = vmatprep.subr.bf16.mxu0 0
        %541 = vmatpush2.bf16.msra.mxu0 0
        %542 = vmatprep.subr.bf16.mxu0 0
        %543 = vmatpush2.bf16.msra.mxu0 0
        %544 = vmatprep.subr.bf16.mxu0 0
        %545 = vmatpush2.bf16.msra.mxu0 0
        %546 = vmatprep.mubr.bf16.mxu0 0
        %547 = vmatmul.mubr.bf16.gmra.mxu0 %v426
        %v548 = vpop.f32.mrf.mxu0
        %v549 = vadd.f32 0.0, %v548
        %v550 = vpop.f32.mrf.mxu0
        %v551 = vpop.f32.mrf.mxu0
        %v552 = vadd.f32 0.0, %v551
        %v553 = vpop.f32.mrf.mxu0
        %554 = vmatprep.mubr.bf16.mxu0 0
        %555 = vmatmul.mubr.bf16.gmra.mxu0 %v427
        %v556 = vpop.f32.mrf.mxu0
        %v557 = vadd.f32 0.0, %v556
        %v558 = vpop.f32.mrf.mxu0
        %v559 = vpop.f32.mrf.mxu0
        %v560 = vadd.f32 0.0, %v559
        %v561 = vpop.f32.mrf.mxu0
        %562 = vmatprep.mubr.bf16.mxu0 0
        %563 = vmatmul.mubr.bf16.gmra.mxu0 %v428
        %v564 = vpop.f32.mrf.mxu0
        %v565 = vadd.f32 0.0, %v564
        %v566 = vpop.f32.mrf.mxu0
        %v567 = vpop.f32.mrf.mxu0
        %v568 = vadd.f32 0.0, %v567
        %v569 = vpop.f32.mrf.mxu0
        %570 = vmatprep.mubr.bf16.mxu0 0
        %571 = vmatmul.mubr.bf16.gmra.mxu0 %v429
        %v572 = vpop.f32.mrf.mxu0
        %v573 = vadd.f32 0.0, %v572
        %v574 = vpop.f32.mrf.mxu0
        %v575 = vpop.f32.mrf.mxu0
        %v576 = vadd.f32 0.0, %v575
        %v577 = vpop.f32.mrf.mxu0
        %578 = vmatprep.mubr.bf16.mxu0 0
        %579 = vmatmul.mubr.bf16.gmra.mxu0 %v430
        %v580 = vpop.f32.mrf.mxu0
        %v581 = vadd.f32 0.0, %v580
        %v582 = vpop.f32.mrf.mxu0
        %v583 = vpop.f32.mrf.mxu0
        %v584 = vadd.f32 0.0, %v583
        %v585 = vpop.f32.mrf.mxu0
        %586 = vmatprep.mubr.bf16.mxu0 0
        %587 = vmatmul.mubr.bf16.gmra.mxu0 %v431
        %v588 = vpop.f32.mrf.mxu0
        %v589 = vadd.f32 0.0, %v588
        %v590 = vpop.f32.mrf.mxu0
        %v591 = vpop.f32.mrf.mxu0
        %v592 = vadd.f32 0.0, %v591
        %v593 = vpop.f32.mrf.mxu0
        %594 = vmatprep.mubr.bf16.mxu0 0
        %595 = vmatmul.mubr.bf16.gmra.mxu0 %v432
        %v596 = vpop.f32.mrf.mxu0
        %v597 = vadd.f32 0.0, %v596
        %v598 = vpop.f32.mrf.mxu0
        %v599 = vpop.f32.mrf.mxu0
        %v600 = vadd.f32 0.0, %v599
        %v601 = vpop.f32.mrf.mxu0
        %602 = vmatprep.mubr.bf16.mxu0 0
        %603 = vmatmul.mubr.bf16.gmra.mxu0 %v433
        %v604 = vpop.f32.mrf.mxu0
        %v605 = vadd.f32 0.0, %v604
        %v606 = vpop.f32.mrf.mxu0
        %v607 = vpop.f32.mrf.mxu0
        %v608 = vadd.f32 0.0, %v607
        %v609 = vpop.f32.mrf.mxu0
        %610 = vdwg.mxu0
        %v611 = vadd.f32 %v434, %v549
        %v612 = vadd.f32 %v435, %v552
        %v613 = vadd.f32 %v436, %v557
        %v614 = vadd.f32 %v437, %v560
        %v615 = vadd.f32 %v438, %v565
        %v616 = vadd.f32 %v439, %v568
        %v617 = vadd.f32 %v440, %v573
        %v618 = vadd.f32 %v441, %v576
        %v619 = vadd.f32 %v442, %v581
        %v620 = vadd.f32 %v443, %v584
        %v621 = vadd.f32 %v444, %v589
        %v622 = vadd.f32 %v445, %v592
        %v623 = vadd.f32 %v446, %v597
        %v624 = vadd.f32 %v447, %v600
        %v625 = vadd.f32 %v448, %v605
        %v626 = vadd.f32 %v449, %v608
        %627 = vst [vmem:[#allocation2] sm:$0xff] %v611
        %628 = vst [vmem:[#allocation2 + $0x8] sm:$0xff] %v612
        %629 = vst [vmem:[#allocation2 + $0x10] sm:$0xff] %v613
        %630 = vst [vmem:[#allocation2 + $0x18] sm:$0xff] %v614
        %631 = vst [vmem:[#allocation2 + $0x20] sm:$0xff] %v615
        %632 = vst [vmem:[#allocation2 + $0x28] sm:$0xff] %v616
        %633 = vst [vmem:[#allocation2 + $0x30] sm:$0xff] %v617
        %634 = vst [vmem:[#allocation2 + $0x38] sm:$0xff] %v618
        %635 = vst [vmem:[#allocation2 + $0x40] sm:$0xff] %v619
        %636 = vst [vmem:[#allocation2 + $0x48] sm:$0xff] %v620
        %637 = vst [vmem:[#allocation2 + $0x50] sm:$0xff] %v621
        %638 = vst [vmem:[#allocation2 + $0x58] sm:$0xff] %v622
        %639 = vst [vmem:[#allocation2 + $0x60] sm:$0xff] %v623
        %640 = vst [vmem:[#allocation2 + $0x68] sm:$0xff] %v624
        %641 = vst [vmem:[#allocation2 + $0x70] sm:$0xff] %v625
        %642 = vst [vmem:[#allocation2 + $0x78] sm:$0xff] %v626
        // Predicated region
        $region53: #{tpu_custom_call.1} parent=39 // pred_check
          %p643 = pneg %p366
        $region54: #{tpu_custom_call.1} parent=39 // pred_check_branch
          %645 = sbr.rel (%p643) target = $region56
        $region55: #{tpu_custom_call.1} parent=39 // pred_region
          %v646 = vld [vmem:[#allocation2] sm:$0xff]
          %v647 = vld [vmem:[#allocation2 + $0x8] sm:$0xff]
          %v648 = vld [vmem:[#allocation2 + $0x10] sm:$0xff]
          %v649 = vld [vmem:[#allocation2 + $0x18] sm:$0xff]
          %v650 = vld [vmem:[#allocation2 + $0x20] sm:$0xff]
          %v651 = vld [vmem:[#allocation2 + $0x28] sm:$0xff]
          %v652 = vld [vmem:[#allocation2 + $0x30] sm:$0xff]
          %v653 = vld [vmem:[#allocation2 + $0x38] sm:$0xff]
          %v654 = vld [vmem:[#allocation2 + $0x40] sm:$0xff]
          %v655 = vld [vmem:[#allocation2 + $0x48] sm:$0xff]
          %v656 = vld [vmem:[#allocation2 + $0x50] sm:$0xff]
          %v657 = vld [vmem:[#allocation2 + $0x58] sm:$0xff]
          %v658 = vld [vmem:[#allocation2 + $0x60] sm:$0xff]
          %v659 = vld [vmem:[#allocation2 + $0x68] sm:$0xff]
          %v660 = vld [vmem:[#allocation2 + $0x70] sm:$0xff]
          %v661 = vld [vmem:[#allocation2 + $0x78] sm:$0xff]
          %v662 = vld [vmem:[%s344] sm:$0xff]
          %v663 = vld [vmem:[%s344 + $0x8] sm:$0xff]
          %v664 = vld [vmem:[%s344 + $0x10] sm:$0xff]
          %v665 = vld [vmem:[%s344 + $0x18] sm:$0xff]
          %v666 = vld [vmem:[%s344 + $0x20] sm:$0xff]
          %v667 = vld [vmem:[%s344 + $0x28] sm:$0xff]
          %v668 = vld [vmem:[%s344 + $0x30] sm:$0xff]
          %v669 = vld [vmem:[%s344 + $0x38] sm:$0xff]
          %v670 = vld [vmem:[%s344 + $0x40] sm:$0xff]
          %v671 = vld [vmem:[%s344 + $0x48] sm:$0xff]
          %v672 = vld [vmem:[%s344 + $0x50] sm:$0xff]
          %v673 = vld [vmem:[%s344 + $0x58] sm:$0xff]
          %v674 = vld [vmem:[%s344 + $0x60] sm:$0xff]
          %v675 = vld [vmem:[%s344 + $0x68] sm:$0xff]
          %v676 = vld [vmem:[%s344 + $0x70] sm:$0xff]
          %v677 = vld [vmem:[%s344 + $0x78] sm:$0xff]
          %679 = vset.pattern.permute.xlu0 0
          %680 = vperm.xlu0 %679, %v662
          %v681 = vpop.permute.xlu0 %680
          %684 = vset.pattern.permute.xlu0 0
          %685 = vperm.xlu0 %684, %v663
          %v686 = vpop.permute.xlu0 %685
          %689 = vset.pattern.permute.xlu0 0
          %690 = vperm.xlu0 %689, %v664
          %v691 = vpop.permute.xlu0 %690
          %694 = vset.pattern.permute.xlu0 0
          %695 = vperm.xlu0 %694, %v665
          %v696 = vpop.permute.xlu0 %695
          %699 = vset.pattern.permute.xlu0 0
          %700 = vperm.xlu0 %699, %v666
          %v701 = vpop.permute.xlu0 %700
          %704 = vset.pattern.permute.xlu0 0
          %705 = vperm.xlu0 %704, %v667
          %v706 = vpop.permute.xlu0 %705
          %709 = vset.pattern.permute.xlu0 0
          %710 = vperm.xlu0 %709, %v668
          %v711 = vpop.permute.xlu0 %710
          %714 = vset.pattern.permute.xlu0 0
          %715 = vperm.xlu0 %714, %v669
          %v716 = vpop.permute.xlu0 %715
          %719 = vset.pattern.permute.xlu0 0
          %720 = vperm.xlu0 %719, %v670
          %v721 = vpop.permute.xlu0 %720
          %724 = vset.pattern.permute.xlu0 0
          %725 = vperm.xlu0 %724, %v671
          %v726 = vpop.permute.xlu0 %725
          %729 = vset.pattern.permute.xlu0 0
          %730 = vperm.xlu0 %729, %v672
          %v731 = vpop.permute.xlu0 %730
          %734 = vset.pattern.permute.xlu0 0
          %735 = vperm.xlu0 %734, %v673
          %v736 = vpop.permute.xlu0 %735
          %739 = vset.pattern.permute.xlu0 0
          %740 = vperm.xlu0 %739, %v674
          %v741 = vpop.permute.xlu0 %740
          %744 = vset.pattern.permute.xlu0 0
          %745 = vperm.xlu0 %744, %v675
          %v746 = vpop.permute.xlu0 %745
          %749 = vset.pattern.permute.xlu0 0
          %750 = vperm.xlu0 %749, %v676
          %v751 = vpop.permute.xlu0 %750
          %754 = vset.pattern.permute.xlu0 0
          %755 = vperm.xlu0 %754, %v677
          %v756 = vpop.permute.xlu0 %755
          %v758 = vmul.f32 %v646, %v681
          %v759 = vmul.f32 %v647, %v686
          %v760 = vmul.f32 %v648, %v691
          %v761 = vmul.f32 %v649, %v696
          %v762 = vmul.f32 %v650, %v701
          %v763 = vmul.f32 %v651, %v706
          %v764 = vmul.f32 %v652, %v711
          %v765 = vmul.f32 %v653, %v716
          %v766 = vmul.f32 %v654, %v721
          %v767 = vmul.f32 %v655, %v726
          %v768 = vmul.f32 %v656, %v731
          %v769 = vmul.f32 %v657, %v736
          %v770 = vmul.f32 %v658, %v741
          %v771 = vmul.f32 %v659, %v746
          %v772 = vmul.f32 %v660, %v751
          %v773 = vmul.f32 %v661, %v756
          %v774 = vpack.c.bf16 %v759, %v758
          %v775 = vpack.c.bf16 %v761, %v760
          %v776 = vpack.c.bf16 %v763, %v762
          %v777 = vpack.c.bf16 %v765, %v764
          %v778 = vpack.c.bf16 %v767, %v766
          %v779 = vpack.c.bf16 %v769, %v768
          %v780 = vpack.c.bf16 %v771, %v770
          %v781 = vpack.c.bf16 %v773, %v772
          %v782 = vld [vmem:[#allocation6] sm:$0xff]
          %v783 = vld [vmem:[#allocation6 + $0x8] sm:$0xff]
          %v784 = vld [vmem:[#allocation6 + $0x10] sm:$0xff]
          %v785 = vld [vmem:[#allocation6 + $0x18] sm:$0xff]
          %v786 = vld [vmem:[#allocation6 + $0x20] sm:$0xff]
          %v787 = vld [vmem:[#allocation6 + $0x28] sm:$0xff]
          %v788 = vld [vmem:[#allocation6 + $0x30] sm:$0xff]
          %v789 = vld [vmem:[#allocation6 + $0x38] sm:$0xff]
          %v790 = vld [vmem:[#allocation6 + $0x40] sm:$0xff]
          %v791 = vld [vmem:[#allocation6 + $0x48] sm:$0xff]
          %v792 = vld [vmem:[#allocation6 + $0x50] sm:$0xff]
          %v793 = vld [vmem:[#allocation6 + $0x58] sm:$0xff]
          %v794 = vld [vmem:[#allocation6 + $0x60] sm:$0xff]
          %v795 = vld [vmem:[#allocation6 + $0x68] sm:$0xff]
          %v796 = vld [vmem:[#allocation6 + $0x70] sm:$0xff]
          %v797 = vld [vmem:[#allocation6 + $0x78] sm:$0xff]
          %v798 = vld [vmem:[%s356] sm:$0xf]
          %v799 = vld [vmem:[%s356 + $0x4] sm:$0xf]
          %v800 = vld [vmem:[%s356 + $0x8] sm:$0xf]
          %v801 = vld [vmem:[%s356 + $0xc] sm:$0xf]
          %v802 = vld [vmem:[%s356 + $0x10] sm:$0xf]
          %v803 = vld [vmem:[%s356 + $0x14] sm:$0xf]
          %v804 = vld [vmem:[%s356 + $0x18] sm:$0xf]
          %v805 = vld [vmem:[%s356 + $0x1c] sm:$0xf]
          %v806 = vld [vmem:[%s356 + $0x20] sm:$0xf]
          %v807 = vld [vmem:[%s356 + $0x24] sm:$0xf]
          %v808 = vld [vmem:[%s356 + $0x28] sm:$0xf]
          %v809 = vld [vmem:[%s356 + $0x2c] sm:$0xf]
          %v810 = vld [vmem:[%s356 + $0x30] sm:$0xf]
          %v811 = vld [vmem:[%s356 + $0x34] sm:$0xf]
          %v812 = vld [vmem:[%s356 + $0x38] sm:$0xf]
          %v813 = vld [vmem:[%s356 + $0x3c] sm:$0xf]
          %v830 = vunpack.c.l.b16 %v798
          %v831 = vunpack.c.l.b16 %v799
          %v832 = vunpack.c.l.b16 %v800
          %v833 = vunpack.c.l.b16 %v801
          %v834 = vunpack.c.l.b16 %v802
          %v835 = vunpack.c.l.b16 %v803
          %v836 = vunpack.c.l.b16 %v804
          %v837 = vunpack.c.l.b16 %v805
          %v838 = vunpack.c.l.b16 %v806
          %v839 = vunpack.c.l.b16 %v807
          %v840 = vunpack.c.l.b16 %v808
          %v841 = vunpack.c.l.b16 %v809
          %v842 = vunpack.c.l.b16 %v810
          %v843 = vunpack.c.l.b16 %v811
          %v844 = vunpack.c.l.b16 %v812
          %v845 = vunpack.c.l.b16 %v813
          %v846 = vpack.c.b16 %v831, %v830
          %v847 = vpack.c.b16 %v833, %v832
          %v848 = vpack.c.b16 %v835, %v834
          %v849 = vpack.c.b16 %v837, %v836
          %v850 = vpack.c.b16 %v839, %v838
          %v851 = vpack.c.b16 %v841, %v840
          %v852 = vpack.c.b16 %v843, %v842
          %v853 = vpack.c.b16 %v845, %v844
          %862 = vmatprep.subr.bf16.mxu0 0
          %863 = vmatpush1.bf16.msra.mxu0 %v853
          %864 = vmatprep.subr.bf16.mxu0 0
          %865 = vmatpush1.bf16.msra.mxu0 %v852
          %866 = vmatprep.subr.bf16.mxu0 0
          %867 = vmatpush1.bf16.msra.mxu0 %v851
          %868 = vmatprep.subr.bf16.mxu0 0
          %869 = vmatpush1.bf16.msra.mxu0 %v850
          %870 = vmatprep.subr.bf16.mxu0 0
          %871 = vmatpush1.bf16.msra.mxu0 %v849
          %872 = vmatprep.subr.bf16.mxu0 0
          %873 = vmatpush1.bf16.msra.mxu0 %v848
          %874 = vmatprep.subr.bf16.mxu0 0
          %875 = vmatpush1.bf16.msra.mxu0 %v847
          %876 = vmatprep.subr.bf16.mxu0 0
          %877 = vmatpush1.bf16.msra.mxu0 %v846
          %878 = vmatprep.subr.bf16.mxu0 0
          %879 = vmatpush2.bf16.msra.mxu0 0
          %880 = vmatprep.subr.bf16.mxu0 0
          %881 = vmatpush2.bf16.msra.mxu0 0
          %882 = vmatprep.subr.bf16.mxu0 0
          %883 = vmatpush2.bf16.msra.mxu0 0
          %884 = vmatprep.subr.bf16.mxu0 0
          %885 = vmatpush2.bf16.msra.mxu0 0
          %886 = vmatprep.subr.bf16.mxu0 0
          %887 = vmatpush2.bf16.msra.mxu0 0
          %888 = vmatprep.subr.bf16.mxu0 0
          %889 = vmatpush2.bf16.msra.mxu0 0
          %890 = vmatprep.subr.bf16.mxu0 0
          %891 = vmatpush2.bf16.msra.mxu0 0
          %892 = vmatprep.subr.bf16.mxu0 0
          %893 = vmatpush2.bf16.msra.mxu0 0
          %894 = vmatprep.mubr.bf16.mxu0 0
          %895 = vmatmul.mubr.bf16.gmra.mxu0 %v774
          %v896 = vpop.f32.mrf.mxu0
          %v897 = vadd.f32 0.0, %v896
          %v898 = vpop.f32.mrf.mxu0
          %v899 = vpop.f32.mrf.mxu0
          %v900 = vadd.f32 0.0, %v899
          %v901 = vpop.f32.mrf.mxu0
          %902 = vmatprep.mubr.bf16.mxu0 0
          %903 = vmatmul.mubr.bf16.gmra.mxu0 %v775
          %v904 = vpop.f32.mrf.mxu0
          %v905 = vadd.f32 0.0, %v904
          %v906 = vpop.f32.mrf.mxu0
          %v907 = vpop.f32.mrf.mxu0
          %v908 = vadd.f32 0.0, %v907
          %v909 = vpop.f32.mrf.mxu0
          %910 = vmatprep.mubr.bf16.mxu0 0
          %911 = vmatmul.mubr.bf16.gmra.mxu0 %v776
          %v912 = vpop.f32.mrf.mxu0
          %v913 = vadd.f32 0.0, %v912
          %v914 = vpop.f32.mrf.mxu0
          %v915 = vpop.f32.mrf.mxu0
          %v916 = vadd.f32 0.0, %v915
          %v917 = vpop.f32.mrf.mxu0
          %918 = vmatprep.mubr.bf16.mxu0 0
          %919 = vmatmul.mubr.bf16.gmra.mxu0 %v777
          %v920 = vpop.f32.mrf.mxu0
          %v921 = vadd.f32 0.0, %v920
          %v922 = vpop.f32.mrf.mxu0
          %v923 = vpop.f32.mrf.mxu0
          %v924 = vadd.f32 0.0, %v923
          %v925 = vpop.f32.mrf.mxu0
          %926 = vmatprep.mubr.bf16.mxu0 0
          %927 = vmatmul.mubr.bf16.gmra.mxu0 %v778
          %v928 = vpop.f32.mrf.mxu0
          %v929 = vadd.f32 0.0, %v928
          %v930 = vpop.f32.mrf.mxu0
          %v931 = vpop.f32.mrf.mxu0
          %v932 = vadd.f32 0.0, %v931
          %v933 = vpop.f32.mrf.mxu0
          %934 = vmatprep.mubr.bf16.mxu0 0
          %935 = vmatmul.mubr.bf16.gmra.mxu0 %v779
          %v936 = vpop.f32.mrf.mxu0
          %v937 = vadd.f32 0.0, %v936
          %v938 = vpop.f32.mrf.mxu0
          %v939 = vpop.f32.mrf.mxu0
          %v940 = vadd.f32 0.0, %v939
          %v941 = vpop.f32.mrf.mxu0
          %942 = vmatprep.mubr.bf16.mxu0 0
          %943 = vmatmul.mubr.bf16.gmra.mxu0 %v780
          %v944 = vpop.f32.mrf.mxu0
          %v945 = vadd.f32 0.0, %v944
          %v946 = vpop.f32.mrf.mxu0
          %v947 = vpop.f32.mrf.mxu0
          %v948 = vadd.f32 0.0, %v947
          %v949 = vpop.f32.mrf.mxu0
          %950 = vmatprep.mubr.bf16.mxu0 0
          %951 = vmatmul.mubr.bf16.gmra.mxu0 %v781
          %v952 = vpop.f32.mrf.mxu0
          %v953 = vadd.f32 0.0, %v952
          %v954 = vpop.f32.mrf.mxu0
          %v955 = vpop.f32.mrf.mxu0
          %v956 = vadd.f32 0.0, %v955
          %v957 = vpop.f32.mrf.mxu0
          %958 = vdwg.mxu0
          %v959 = vadd.f32 %v782, %v897
          %v960 = vadd.f32 %v783, %v900
          %v961 = vadd.f32 %v784, %v905
          %v962 = vadd.f32 %v785, %v908
          %v963 = vadd.f32 %v786, %v913
          %v964 = vadd.f32 %v787, %v916
          %v965 = vadd.f32 %v788, %v921
          %v966 = vadd.f32 %v789, %v924
          %v967 = vadd.f32 %v790, %v929
          %v968 = vadd.f32 %v791, %v932
          %v969 = vadd.f32 %v792, %v937
          %v970 = vadd.f32 %v793, %v940
          %v971 = vadd.f32 %v794, %v945
          %v972 = vadd.f32 %v795, %v948
          %v973 = vadd.f32 %v796, %v953
          %v974 = vadd.f32 %v797, %v956
          %975 = vst [vmem:[#allocation6] sm:$0xff] %v959
          %976 = vst [vmem:[#allocation6 + $0x8] sm:$0xff] %v960
          %977 = vst [vmem:[#allocation6 + $0x10] sm:$0xff] %v961
          %978 = vst [vmem:[#allocation6 + $0x18] sm:$0xff] %v962
          %979 = vst [vmem:[#allocation6 + $0x20] sm:$0xff] %v963
          %980 = vst [vmem:[#allocation6 + $0x28] sm:$0xff] %v964
          %981 = vst [vmem:[#allocation6 + $0x30] sm:$0xff] %v965
          %982 = vst [vmem:[#allocation6 + $0x38] sm:$0xff] %v966
          %983 = vst [vmem:[#allocation6 + $0x40] sm:$0xff] %v967
          %984 = vst [vmem:[#allocation6 + $0x48] sm:$0xff] %v968
          %985 = vst [vmem:[#allocation6 + $0x50] sm:$0xff] %v969
          %986 = vst [vmem:[#allocation6 + $0x58] sm:$0xff] %v970
          %987 = vst [vmem:[#allocation6 + $0x60] sm:$0xff] %v971
          %988 = vst [vmem:[#allocation6 + $0x68] sm:$0xff] %v972
          %989 = vst [vmem:[#allocation6 + $0x70] sm:$0xff] %v973
          %990 = vst [vmem:[#allocation6 + $0x78] sm:$0xff] %v974
        $region56: #{tpu_custom_call.1} parent=39 // pred_fallthru
          _
        %p991 = scmp.eq.s32.totalorder %s26, 2
        %p992 = pnand %p991, %p366
        %p993 = pneg %p992
        // Predicated region
        $region57: #{tpu_custom_call.1} parent=39 // pred_check
          _
        $region58: #{tpu_custom_call.1} parent=39 // pred_check_branch
          %995 = sbr.rel (%p992) target = $region60
        $region59: #{tpu_custom_call.1} parent=39 // pred_region
          %v996 = vld [vmem:[#allocation6] sm:$0xff]
          %v997 = vld [vmem:[#allocation6 + $0x8] sm:$0xff]
          %v998 = vld [vmem:[#allocation6 + $0x10] sm:$0xff]
          %v999 = vld [vmem:[#allocation6 + $0x18] sm:$0xff]
          %v1000 = vld [vmem:[#allocation6 + $0x20] sm:$0xff]
          %v1001 = vld [vmem:[#allocation6 + $0x28] sm:$0xff]
          %v1002 = vld [vmem:[#allocation6 + $0x30] sm:$0xff]
          %v1003 = vld [vmem:[#allocation6 + $0x38] sm:$0xff]
          %v1004 = vld [vmem:[#allocation6 + $0x40] sm:$0xff]
          %v1005 = vld [vmem:[#allocation6 + $0x48] sm:$0xff]
          %v1006 = vld [vmem:[#allocation6 + $0x50] sm:$0xff]
          %v1007 = vld [vmem:[#allocation6 + $0x58] sm:$0xff]
          %v1008 = vld [vmem:[#allocation6 + $0x60] sm:$0xff]
          %v1009 = vld [vmem:[#allocation6 + $0x68] sm:$0xff]
          %v1010 = vld [vmem:[#allocation6 + $0x70] sm:$0xff]
          %v1011 = vld [vmem:[#allocation6 + $0x78] sm:$0xff]
          %v1012 = vmax.f32 %v996, 0.0
          %v1013 = vmax.f32 %v997, 0.0
          %v1014 = vmax.f32 %v998, 0.0
          %v1015 = vmax.f32 %v999, 0.0
          %v1016 = vmax.f32 %v1000, 0.0
          %v1017 = vmax.f32 %v1001, 0.0
          %v1018 = vmax.f32 %v1002, 0.0
          %v1019 = vmax.f32 %v1003, 0.0
          %v1020 = vmax.f32 %v1004, 0.0
          %v1021 = vmax.f32 %v1005, 0.0
          %v1022 = vmax.f32 %v1006, 0.0
          %v1023 = vmax.f32 %v1007, 0.0
          %v1024 = vmax.f32 %v1008, 0.0
          %v1025 = vmax.f32 %v1009, 0.0
          %v1026 = vmax.f32 %v1010, 0.0
          %v1027 = vmax.f32 %v1011, 0.0
          %1028 = vst [vmem:[#allocation6] sm:$0xff] %v1012
          %1029 = vst [vmem:[#allocation6 + $0x8] sm:$0xff] %v1013
          %1030 = vst [vmem:[#allocation6 + $0x10] sm:$0xff] %v1014
          %1031 = vst [vmem:[#allocation6 + $0x18] sm:$0xff] %v1015
          %1032 = vst [vmem:[#allocation6 + $0x20] sm:$0xff] %v1016
          %1033 = vst [vmem:[#allocation6 + $0x28] sm:$0xff] %v1017
          %1034 = vst [vmem:[#allocation6 + $0x30] sm:$0xff] %v1018
          %1035 = vst [vmem:[#allocation6 + $0x38] sm:$0xff] %v1019
          %1036 = vst [vmem:[#allocation6 + $0x40] sm:$0xff] %v1020
          %1037 = vst [vmem:[#allocation6 + $0x48] sm:$0xff] %v1021
          %1038 = vst [vmem:[#allocation6 + $0x50] sm:$0xff] %v1022
          %1039 = vst [vmem:[#allocation6 + $0x58] sm:$0xff] %v1023
          %1040 = vst [vmem:[#allocation6 + $0x60] sm:$0xff] %v1024
          %1041 = vst [vmem:[#allocation6 + $0x68] sm:$0xff] %v1025
          %1042 = vst [vmem:[#allocation6 + $0x70] sm:$0xff] %v1026
          %1043 = vst [vmem:[#allocation6 + $0x78] sm:$0xff] %v1027
        $region60: #{tpu_custom_call.1} parent=39 // pred_fallthru
          _
        // Predicated region
        $region61: #{tpu_custom_call.1} parent=39 // pred_check
          %p1044 = pneg %p193
        $region62: #{tpu_custom_call.1} parent=39 // pred_check_branch
          %1046 = sbr.rel (%p1044) target = $region64
        $region63: #{tpu_custom_call.1} parent=39 // pred_region
          %s1047 = smul.u32 16, %s25
          %s1049 = ssub.s32 2048, 2048
          %1050 = vsyncadd [#allocation5], %s1049
          %s1051 = smul.addr %s1047, 128
          %s1052 = scalar_lea.hbm %s5, %s1051
          %s1053 = sshll.u32 [#allocation6], 4
          %s1054 = int_to_ptr.vmem [resolvable:$true] %s1053
          %1059 = dma.vmem_to_hbm [thread:$0]  %s1054, 2048, %s1052, [#allocation5], 128, 128, 8
        $region64: #{tpu_custom_call.1} parent=39 // pred_fallthru
          _
        // Predicated region
        $region65: #{tpu_custom_call.1} parent=39 // pred_check
          %p1060 = pneg %p193
        $region66: #{tpu_custom_call.1} parent=39 // pred_check_branch
          %1062 = sbr.rel (%p1060) target = $region68
        $region67: #{tpu_custom_call.1} parent=39 // pred_region
          %1063 = dma.done [#allocation5], 2048
        $region68: #{tpu_custom_call.1} parent=39 // pred_fallthru
          _
      $region40: #{tpu_custom_call.1} parent=5 // pred_fallthru
        _
      %p1064 = scmp.le.s32.totalorder 2, %s15
      // Predicated region
      $region69: #{tpu_custom_call.1} parent=5 // pred_check
        %p1065 = pneg %p1064
      $region70: #{tpu_custom_call.1} parent=5 // pred_check_branch
        %1067 = sbr.rel (%p1065) target = $region72
      $region71: #{tpu_custom_call.1} parent=5 // pred_region
        %s1068 = ssub.s32 %s15, 2
      $region72: #{tpu_custom_call.1} parent=5 // pred_fallthru
        _
    $region6: #{tpu_custom_call.1} parent=1 // loop_footer
      %s19 = sadd.s32 1, %s15
    $region7: #{tpu_custom_call.1} parent=1 // loop_footer_branch
      %14 = sbr.rel target = $region3
    $region8: #{tpu_custom_call.1} parent=1 // loop_exit
      _
    %1069 = vsyncpa [#allocation4], 1
    %s1070 = scalar_lea.sflag [#allocation4], 1
    %1071 = vsyncpa %s1070, 1
    %1072 = vsyncpa [#allocation5], 1
    %s1073 = scalar_lea.sflag [#allocation5], 1
    %1074 = vsyncpa %s1073, 1

</llo_original>
